<compile_context>
chip_gen: v7x
topology: tpu7x:2x2x1
jax: 0.10.0
libtpu: 0.0.40
codegen_flags: <defaults>
</compile_context>

<pallas_src>
import functools

import jax
import jax.numpy as jnp
from jax.experimental import pallas as pl
from jax.experimental.pallas import tpu as pltpu


def _sum_pool_kernel(x_ref, o_ref, acc_ref, *, hw, t_hw):
    """Streamed global average pool over the spatial (lane) axis.

    x_ref:   (1, C, t_hw)  one spatial tile of one batch element
    o_ref:   (1, C, 1)     per-channel mean (written on the last tile)
    acc_ref: (C, 1) f32    running sum across spatial tiles
    """
    k = pl.program_id(1)

    @pl.when(k == 0)
    def _init():
        acc_ref[...] = jnp.zeros_like(acc_ref)

    x = x_ref[0].astype(jnp.float32)                       # (C, t_hw)

    # Mask the ragged tail so both the sum and the final divide use true HW.
    if hw % t_hw != 0:
        col = jax.lax.broadcasted_iota(jnp.int32, x.shape, 1) + k * t_hw
        x = jnp.where(col < hw, x, 0.0)

    acc_ref[...] += jnp.sum(x, axis=-1, keepdims=True)     # lane reduce -> (C, 1)

    @pl.when(k == pl.num_programs(1) - 1)
    def _finalize():
        mean = acc_ref[...] * (1.0 / hw)                   # (C, 1)
        o_ref[...] = mean[None].astype(o_ref.dtype)        # (1, C, 1)


def _scale_kernel(x_ref, g_ref, o_ref):
    """Excite: out = x * gate (gate broadcast over the spatial/lane axis).

    x_ref: (1, C, t_hw), g_ref: (1, C, 1), o_ref: (1, C, t_hw)
    """
    o_ref[...] = x_ref[...] * g_ref[...]


def _pick_hw_tile(hw, target=512):
    """Lane-aligned spatial tile: multiple of 128, or the full extent."""
    if hw <= target or hw < 128:
        return hw
    return max(128, (target // 128) * 128)


def se_attention(x_nchw, w1, w2, *, hw_tile=512):
    """SEAttention forward.

    x_nchw: [B, C, H, W]
    w1:     [C//r, C]  (Linear C -> C//r, bias=False)
    w2:     [C, C//r]  (Linear C//r -> C, bias=False)
    returns [B, C, H, W] = x * sigmoid(fc(avg_pool(x)))
    """
    B, C, H, W = x_nchw.shape
    HW = H * W

    # Pure reshape of NCHW — no transpose, no extra HBM traffic.
    x = x_nchw.reshape(B, C, HW)

    t = _pick_hw_tile(HW, hw_tile)
    n_tiles = pl.cdiv(HW, t)

    vmem_cap = 32 * 1024 * 1024  # explicit; safe on v5e/v6e/v7x scoped VMEM

    # ---- Squeeze: streamed global average pool -> (B, C, 1) in f32 ----------
    pooled = pl.pallas_call(
        functools.partial(_sum_pool_kernel, hw=HW, t_hw=t),
        out_shape=jax.ShapeDtypeStruct((B, C, 1), jnp.float32),
        grid_spec=pltpu.PrefetchScalarGridSpec(
            num_scalar_prefetch=0,
            grid=(B, n_tiles),
            in_specs=[pl.BlockSpec((1, C, t), lambda b, k: (b, 0, k))],
            out_specs=pl.BlockSpec((1, C, 1), lambda b, k: (b, 0, 0)),
            scratch_shapes=[pltpu.VMEM((C, 1), jnp.float32)],
        ),
        compiler_params=pltpu.CompilerParams(
            dimension_semantics=("parallel", "arbitrary"),
            vmem_limit_bytes=vmem_cap,
        ),
    )(x)

    # ---- Tiny excite MLP on (B, C): plain XLA (hoisted out of Pallas) -------
    avg = pooled[:, :, 0]                                        # (B, C) f32
    hid = jnp.maximum(avg @ w1.T.astype(jnp.float32), 0.0)       # (B, C//r)
    gate = jax.nn.sigmoid(hid @ w2.T.astype(jnp.float32))        # (B, C)
    gate = gate.astype(x.dtype)[:, :, None]                      # (B, C, 1)

    # ---- Excite: streamed channel-wise scale, x * gate ----------------------
    out = pl.pallas_call(
        _scale_kernel,
        out_shape=jax.ShapeDtypeStruct((B, C, HW), x.dtype),
        grid_spec=pltpu.PrefetchScalarGridSpec(
            num_scalar_prefetch=0,
            grid=(B, n_tiles),
            in_specs=[
                pl.BlockSpec((1, C, t), lambda b, k: (b, 0, k)),
                pl.BlockSpec((1, C, 1), lambda b, k: (b, 0, 0)),
            ],
            out_specs=pl.BlockSpec((1, C, t), lambda b, k: (b, 0, k)),
        ),
        compiler_params=pltpu.CompilerParams(
            dimension_semantics=("parallel", "parallel"),
            vmem_limit_bytes=vmem_cap,
        ),
    )(x, gate)

    return out.reshape(B, C, H, W)


def _reference(x, w1, w2):
    """Pure-JAX reference mirroring the PyTorch SEAttention forward."""
    y = jnp.mean(x, axis=(2, 3))                                 # (B, C)
    y = jnp.maximum(y @ w1.T, 0.0)                               # (B, C//r)
    y = jax.nn.sigmoid(y @ w2.T)                                 # (B, C)
    return x * y[:, :, None, None]


if __name__ == "__main__":
    # Small shapes consistent with the module (reduction=16 needs C >= 16).
    B, C, H, W = 2, 64, 16, 16
    reduction = 16
    Ch = C // reduction                                          # hidden = 4

    key = jax.random.PRNGKey(0)
    kx, k1, k2 = jax.random.split(key, 3)
    x = jax.random.normal(kx, (B, C, H, W), dtype=jnp.float32)
    w1 = jax.random.normal(k1, (Ch, C), dtype=jnp.float32) * 0.1  # Linear(C -> C//r)
    w2 = jax.random.normal(k2, (C, Ch), dtype=jnp.float32) * 0.1  # Linear(C//r -> C)

    out = se_attention(x, w1, w2)
    jax.block_until_ready(out)

    ref = _reference(x, w1, w2)
    assert out.shape == (B, C, H, W), out.shape
    assert jnp.allclose(out, ref, atol=1e-5, rtol=1e-5), float(
        jnp.max(jnp.abs(out - ref)))

    print("KERNEL_OK")
</pallas_src>

<mosaic_0001>
module attributes {stable_mosaic.version = 11 : i64} {
  func.func @_sum_pool_kernel(%arg0: i32, %arg1: i32, %arg2: memref<1x64x256xf32, #tpu.memory_space<vmem>>, %arg3: memref<1x64x1xf32, #tpu.memory_space<vmem>>, %arg4: memref<64x1xf32, #tpu.memory_space<vmem>>) attributes {dimension_semantics = [#tpu.dimension_semantics<parallel>, #tpu.dimension_semantics<arbitrary>], iteration_bounds = array<i64: 2, 1>, scalar_prefetch = 0 : i64, scratch_operands = 1 : i64, tpu.core_type = #tpu.core_type<tc>, window_params = [{transform_indices = @transform_0, window_bounds = array<i64: 1, 64, 256>}, {transform_indices = @transform_1, window_bounds = array<i64: 1, 64, 1>}]} {
    %c0_i32 = arith.constant 0 : i32
    %0 = arith.cmpi eq, %arg1, %c0_i32 : i32
    %1 = arith.extui %0 : i1 to i32
    %c0_i32_0 = arith.constant 0 : i32
    %2 = arith.cmpi ne, %1, %c0_i32_0 : i32
    scf.if %2 {
      %cst_9 = arith.constant 0.000000e+00 : f32
      %13 = vector.broadcast %cst_9 : f32 to vector<64x1xf32>
      %c0_10 = arith.constant 0 : index
      %c0_11 = arith.constant 0 : index
      %14 = vector.load %arg4[%c0_10, %c0_11] : memref<64x1xf32, #tpu.memory_space<vmem>>, vector<64x1xf32>
      tpu.vector_store %arg4[%c0_10, %c0_11], %13 {strides = array<i32>} : memref<64x1xf32, #tpu.memory_space<vmem>>, vector<64x1xf32>,
    } else {
    }
    %c0 = arith.constant 0 : index
    %c0_1 = arith.constant 0 : index
    %c0_2 = arith.constant 0 : index
    %3 = vector.load %arg2[%c0, %c0_1, %c0_2] : memref<1x64x256xf32, #tpu.memory_space<vmem>>, vector<1x64x256xf32>
    %4 = vector.shape_cast %3 : vector<1x64x256xf32> to vector<64x256xf32>
    %c0_3 = arith.constant 0 : index
    %c0_4 = arith.constant 0 : index
    %5 = vector.load %arg4[%c0_3, %c0_4] : memref<64x1xf32, #tpu.memory_space<vmem>>, vector<64x1xf32>
    %cst = arith.constant dense<0.000000e+00> : vector<64xf32>
    %6 = vector.multi_reduction <add>, %4, %cst [1] : vector<64x256xf32> to vector<64xf32>
    %7 = vector.shape_cast %6 : vector<64xf32> to vector<64x1xf32>
    %8 = arith.addf %5, %7 : vector<64x1xf32>
    %c0_5 = arith.constant 0 : index
    %c0_6 = arith.constant 0 : index
    %9 = vector.load %arg4[%c0_5, %c0_6] : memref<64x1xf32, #tpu.memory_space<vmem>>, vector<64x1xf32>
    tpu.vector_store %arg4[%c0_5, %c0_6], %8 {strides = array<i32>} : memref<64x1xf32, #tpu.memory_space<vmem>>, vector<64x1xf32>,
    %c0_i32_7 = arith.constant 0 : i32
    %10 = arith.cmpi eq, %arg1, %c0_i32_7 : i32
    %11 = arith.extui %10 : i1 to i32
    %c0_i32_8 = arith.constant 0 : i32
    %12 = arith.cmpi ne, %11, %c0_i32_8 : i32
    scf.if %12 {
      %c0_9 = arith.constant 0 : index
      %c0_10 = arith.constant 0 : index
      %13 = vector.load %arg4[%c0_9, %c0_10] : memref<64x1xf32, #tpu.memory_space<vmem>>, vector<64x1xf32>
      %cst_11 = arith.constant 3.906250e-03 : f32
      %14 = vector.broadcast %cst_11 : f32 to vector<64x1xf32>
      %15 = arith.mulf %13, %14 : vector<64x1xf32>
      %16 = vector.shape_cast %15 : vector<64x1xf32> to vector<1x64x1xf32>
      %c0_12 = arith.constant 0 : index
      %c0_13 = arith.constant 0 : index
      %c0_14 = arith.constant 0 : index
      %17 = vector.load %arg3[%c0_12, %c0_13, %c0_14] : memref<1x64x1xf32, #tpu.memory_space<vmem>>, vector<1x64x1xf32>
      tpu.vector_store %arg3[%c0_12, %c0_13, %c0_14], %16 {strides = array<i32>} : memref<1x64x1xf32, #tpu.memory_space<vmem>>, vector<1x64x1xf32>,
    } else {
    }
    return
  }
  func.func @transform_0(%arg0: i32, %arg1: i32) -> (i32, i32, i32) {
    %c0_i32 = arith.constant 0 : i32
    %c0_i32_0 = arith.constant 0 : i32
    return %arg0, %c0_i32, %arg1 : i32, i32, i32
  }
  func.func @transform_1(%arg0: i32, %arg1: i32) -> (i32, i32, i32) {
    %c0_i32 = arith.constant 0 : i32
    %c0_i32_0 = arith.constant 0 : i32
    %c0_i32_1 = arith.constant 0 : i32
    return %arg0, %c0_i32, %c0_i32_0 : i32, i32, i32
  }
}

</mosaic_0001>

<llo_original>
// kernel: tpu_custom_call.1
$region0: #{tpu_custom_call.1}
  #allocation0 [shape = 'u32[]', space=smem, size = 0x4, offset = 0x4, fixed_abs, tag = 'smem constant byte address 0x4 - core index']
  #allocation1 [shape = 'u32[144,128]{1,0:T(1,128)}', space=vmem, size = 0x12000, scoped, tag = 'internal scratch']
  #allocation2 [shape = 'f32[64,1]{1,0:T(8,128)}', space=vmem, size = 0x8000, scoped, tag = 'scratch operand']
  %s0 = inlined_call_operand.hbm [shape: f32[2,64,256], index: 0, kind: input, shape index: {}]
  %s1 = inlined_call_operand.vmem [shape: f32[2,64,1], index: 1, kind: output, shape index: {}]
  %s2 = sld [smem:[#allocation0]]
  $region49: #{tpu_custom_call.1} parent=0
    _
  %s4 = ssub.s32 1, %s2
  %s5 = scalar_select 0, %s4, %s2
  $region1: #{tpu_custom_call.1} parent=0
    #allocation3 [shape = 'u8[131072]{0}', space=vmem, size = 0x20000, scoped, tag = 'input window, operand 0']
    #allocation4 [shape = 's32[2]{0}', space=sflag, size = 0x8, scoped, tag = 'scoped memory for tpu_custom_call.1']
    %6 = vsyncpa [#allocation4], 0
    %s7 = scalar_lea.sflag [#allocation4], 1
    %8 = vsyncpa %s7, 0
    loop: start=0, step=1, limit=4
    $region2: #{tpu_custom_call.1} parent=1 // loop_pre_header
      _
    $region3: #{tpu_custom_call.1} parent=1 // loop_header
      %s10 = sphi 0, %s14
      %p11 = scmp.ge.s32.totalorder %s10, 4
      %s17 = sphi 0, %s29
      %s18 = sphi 0, %s25
      %s19 = sphi 0, %s17
      %s20 = sphi 0, %s18
      %s21 = sphi 0, %s19
      %s22 = sphi 0, %s20
      %s34 = sphi 0, %s36
      %s37 = sphi 0, %s34
      %s38 = sphi 0, %s37
      %s54 = sphi 0, %s38
      %s60 = sphi 0, %s62
      %s63 = sphi 0, %s60
      %s64 = sphi 0, %s63
      %s80 = sphi 0, %s64
    $region4: #{tpu_custom_call.1} parent=1 // loop_header_branch
      %13 = sbr.rel (%p11) target = $region8
    $region5: #{tpu_custom_call.1} parent=1 // loop_body
      %s15 = ssub.s32 %s10, 1
      %s16 = ssub.s32 %s10, 2
      %s23 = sadd.s32 1, %s18
      %p24 = scmp.ge.s32.totalorder %s23, 1
      %s25 = scalar_select %p24, 0, %s23
      %s26 = sadd.s32 1, %s17
      %s27 = scalar_select %p24, %s26, %s17
      %p28 = scmp.ge.s32.totalorder %s27, 2
      %s29 = scalar_select %p28, 0, %s27
      %s30 = ssub.s32 %s17, %s29
      %s31 = ssub.s32 %s18, %s25
      %s32 = sor.u32 %s30, %s31
      %p33 = scmp.eq.s32.totalorder %s32, 0
      %s35 = sadd.s32 %s34, 1
      %s36 = scalar_select %p33, %s34, %s35
      %p39 = pneg %p33
      %p40 = scmp.eq.s32.totalorder %s10, 1
      %p41 = por %p39, %p40
      %p42 = scmp.ne.s32.totalorder %s34, %s37
      %p43 = scmp.eq.s32.totalorder %s10, 0
      %p44 = por %p42, %p43
      %p45 = scmp.ne.s32.totalorder %s34, %s37
      %p46 = scmp.eq.s32.totalorder %s15, 1
      %p47 = por %p45, %p46
      %p48 = scmp.ne.s32.totalorder %s37, %s38
      %p49 = scmp.eq.s32.totalorder %s15, 0
      %p50 = por %p48, %p49
      %p51 = scmp.ne.s32.totalorder %s37, %s38
      %p52 = scmp.eq.s32.totalorder %s16, 1
      %p53 = por %p51, %p52
      %p55 = scmp.ne.s32.totalorder %s38, %s54
      %p56 = scmp.eq.s32.totalorder %s16, 0
      %p57 = por %p55, %p56
      %s58 = ssub.s32 %s17, %s29
      %p59 = scmp.eq.s32.totalorder %s58, 0
      %s61 = sadd.s32 %s60, 1
      %s62 = scalar_select %p59, %s60, %s61
      %p65 = pneg %p59
      %p66 = scmp.eq.s32.totalorder %s10, 1
      %p67 = por %p65, %p66
      %p68 = scmp.ne.s32.totalorder %s60, %s63
      %p69 = scmp.eq.s32.totalorder %s10, 0
      %p70 = por %p68, %p69
      %p71 = scmp.ne.s32.totalorder %s60, %s63
      %p72 = scmp.eq.s32.totalorder %s15, 1
      %p73 = por %p71, %p72
      %p74 = scmp.ne.s32.totalorder %s63, %s64
      %p75 = scmp.eq.s32.totalorder %s15, 0
      %p76 = por %p74, %p75
      %p77 = scmp.ne.s32.totalorder %s63, %s64
      %p78 = scmp.eq.s32.totalorder %s16, 1
      %p79 = por %p77, %p78
      %p81 = scmp.ne.s32.totalorder %s64, %s80
      %p82 = scmp.eq.s32.totalorder %s16, 0
      %p83 = por %p81, %p82
      %p84 = scmp.le.s32.totalorder 1, %s10
      %p85 = scmp.lt.s32.totalorder %s10, 3
      %p86 = pnand %p84, %p85
      %p87 = pneg %p86
      // Predicated region
      $region9: #{tpu_custom_call.1} parent=5 // pred_check
        _
      $region10: #{tpu_custom_call.1} parent=5 // pred_check_branch
        %89 = sbr.rel (%p86) target = $region12
      $region11: #{tpu_custom_call.1} parent=5 // pred_region
        %s90 = ssub.s32 %s10, 1
      $region12: #{tpu_custom_call.1} parent=5 // pred_fallthru
        _
      %p91 = scmp.lt.s32.totalorder %s10, 2
      // Predicated region
      $region13: #{tpu_custom_call.1} parent=5 // pred_check
        %p92 = pneg %p91
      $region14: #{tpu_custom_call.1} parent=5 // pred_check_branch
        %94 = sbr.rel (%p92) target = $region16
      $region15: #{tpu_custom_call.1} parent=5 // pred_region
        // Predicated region
        $region17: #{tpu_custom_call.1} parent=15 // pred_check
          %p95 = pneg %p44
        $region18: #{tpu_custom_call.1} parent=15 // pred_check_branch
          %97 = sbr.rel (%p95) target = $region20
        $region19: #{tpu_custom_call.1} parent=15 // pred_region
          %s98 = sand.u32 %s34, 1
          %s99 = scalar_lea.sflag [#allocation4], %s98
          %s100 = sand.u32 %s34, 1
          %s101 = smul.addr %s100, 128
          %s102 = scalar_lea.vmem [#allocation3], %s101
          %s103 = smul.u32 2, %s18
          %s105 = ssub.s32 2048, 2048
          %106 = vsyncadd %s99, %s105
          %s107 = smul.addr %s17, 16
          %s108 = sadd.s32 %s103, %s107
          %s109 = smul.addr %s108, 128
          %s110 = scalar_lea.hbm %s0, %s109
          %s111 = sshll.u32 %s102, 4
          %s112 = int_to_ptr.vmem [resolvable:$true] %s111
          %117 = dma.hbm_to_vmem [thread:$0]  %s110, 2048, %s112, %s99, 256, 256, 16
        $region20: #{tpu_custom_call.1} parent=15 // pred_fallthru
          _
      $region16: #{tpu_custom_call.1} parent=5 // pred_fallthru
        _
      %p118 = scmp.le.s32.totalorder 1, %s10
      %p119 = scmp.lt.s32.totalorder %s10, 3
      %p120 = pnand %p118, %p119
      %p121 = pneg %p120
      // Predicated region
      $region21: #{tpu_custom_call.1} parent=5 // pred_check
        _
      $region22: #{tpu_custom_call.1} parent=5 // pred_check_branch
        %123 = sbr.rel (%p120) target = $region24
      $region23: #{tpu_custom_call.1} parent=5 // pred_region
        %s124 = ssub.s32 %s10, 1
        %s125 = sand.u32 %s37, 1
        %s126 = scalar_lea.sflag [#allocation4], %s125
        %s127 = sand.u32 %s37, 1
        %s128 = smul.addr %s127, 128
        %s129 = scalar_lea.vmem [#allocation3], %s128
        // Predicated region
        $region25: #{tpu_custom_call.1} parent=23 // pred_check
          %p130 = pneg %p50
        $region26: #{tpu_custom_call.1} parent=23 // pred_check_branch
          %132 = sbr.rel (%p130) target = $region28
        $region27: #{tpu_custom_call.1} parent=23 // pred_region
          %133 = dma.done %s126, 2048
        $region28: #{tpu_custom_call.1} parent=23 // pred_fallthru
          _
        %s134 = sand.u32 %s37, 1
        %s135 = scalar_lea.sflag [#allocation4], %s134
        %s136 = sand.u32 %s37, 1
        %s137 = smul.addr %s136, 128
        %s138 = scalar_lea.vmem [#allocation3], %s137
        %p139 = pneg %p50
        %p140 = pneg %p47
        %p141 = pneg %p76
        %p142 = pneg %p73
        %p143 = scmp.lt.s32.totalorder %s19, 1
        %s144 = scalar_select %p143, %s19, 1
        %s145 = smul.addr %s144, 8
        %s146 = smul.addr %s145, 8
        %s147 = scalar_lea.vmem %s1, %s146
        %s148 = smul.u32 2, %s20
        %p149 = scmp.lt.s32.totalorder %s19, 1
        %s150 = scalar_select %p149, %s19, 1
        %s151 = smul.addr %s150, 8
        %s152 = smul.addr %s151, 8
        %s153 = scalar_lea.vmem %s1, %s152
        %p154 = scmp.eq.s32.totalorder %s20, 0
        // Predicated region
        $region29: #{tpu_custom_call.1} parent=23 // pred_check
          %p155 = pneg %p154
        $region30: #{tpu_custom_call.1} parent=23 // pred_check_branch
          %157 = sbr.rel (%p155) target = $region32
        $region31: #{tpu_custom_call.1} parent=23 // pred_region
          %vm158 = vcmask 7168
          %159 = vst.msk [vmem:[#allocation2] sm:$0xff] %vm158, 0.0
          %160 = vst.msk [vmem:[#allocation2 + $0x8] sm:$0xff] %vm158, 0.0
          %161 = vst.msk [vmem:[#allocation2 + $0x10] sm:$0xff] %vm158, 0.0
          %162 = vst.msk [vmem:[#allocation2 + $0x18] sm:$0xff] %vm158, 0.0
          %163 = vst.msk [vmem:[#allocation2 + $0x20] sm:$0xff] %vm158, 0.0
          %164 = vst.msk [vmem:[#allocation2 + $0x28] sm:$0xff] %vm158, 0.0
          %165 = vst.msk [vmem:[#allocation2 + $0x30] sm:$0xff] %vm158, 0.0
          %166 = vst.msk [vmem:[#allocation2 + $0x38] sm:$0xff] %vm158, 0.0
        $region32: #{tpu_custom_call.1} parent=23 // pred_fallthru
          _
        %v167 = vld [vmem:[%s129] sm:$0xff]
        %v168 = vld [vmem:[%s129 + $0x8] sm:$0xff]
        %v169 = vld [vmem:[%s129 + $0x10] sm:$0xff]
        %v170 = vld [vmem:[%s129 + $0x18] sm:$0xff]
        %v171 = vld [vmem:[%s129 + $0x20] sm:$0xff]
        %v172 = vld [vmem:[%s129 + $0x28] sm:$0xff]
        %v173 = vld [vmem:[%s129 + $0x30] sm:$0xff]
        %v174 = vld [vmem:[%s129 + $0x38] sm:$0xff]
        %v175 = vld [vmem:[%s129 + $0x40] sm:$0xff]
        %v176 = vld [vmem:[%s129 + $0x48] sm:$0xff]
        %v177 = vld [vmem:[%s129 + $0x50] sm:$0xff]
        %v178 = vld [vmem:[%s129 + $0x58] sm:$0xff]
        %v179 = vld [vmem:[%s129 + $0x60] sm:$0xff]
        %v180 = vld [vmem:[%s129 + $0x68] sm:$0xff]
        %v181 = vld [vmem:[%s129 + $0x70] sm:$0xff]
        %v182 = vld [vmem:[%s129 + $0x78] sm:$0xff]
        %v183 = vld [vmem:[#allocation2] sm:$0xff]
        %v184 = vld [vmem:[#allocation2 + $0x8] sm:$0xff]
        %v185 = vld [vmem:[#allocation2 + $0x10] sm:$0xff]
        %v186 = vld [vmem:[#allocation2 + $0x18] sm:$0xff]
        %v187 = vld [vmem:[#allocation2 + $0x20] sm:$0xff]
        %v188 = vld [vmem:[#allocation2 + $0x28] sm:$0xff]
        %v189 = vld [vmem:[#allocation2 + $0x30] sm:$0xff]
        %v190 = vld [vmem:[#allocation2 + $0x38] sm:$0xff]
        %v191 = vadd.f32 %v167, %v168
        %192 = vadd.xlane.f32.xlu0 %v191
        %v193 = vpop.xlane.xlu0 %192
        %v194 = vadd.f32 %v169, %v170
        %195 = vadd.xlane.f32.xlu0 %v194
        %v196 = vpop.xlane.xlu0 %195
        %v197 = vadd.f32 %v171, %v172
        %198 = vadd.xlane.f32.xlu0 %v197
        %v199 = vpop.xlane.xlu0 %198
        %v200 = vadd.f32 %v173, %v174
        %201 = vadd.xlane.f32.xlu0 %v200
        %v202 = vpop.xlane.xlu0 %201
        %v203 = vadd.f32 %v175, %v176
        %204 = vadd.xlane.f32.xlu0 %v203
        %v205 = vpop.xlane.xlu0 %204
        %v206 = vadd.f32 %v177, %v178
        %207 = vadd.xlane.f32.xlu0 %v206
        %v208 = vpop.xlane.xlu0 %207
        %v209 = vadd.f32 %v179, %v180
        %210 = vadd.xlane.f32.xlu0 %v209
        %v211 = vpop.xlane.xlu0 %210
        %v212 = vadd.f32 %v181, %v182
        %213 = vadd.xlane.f32.xlu0 %v212
        %v214 = vpop.xlane.xlu0 %213
        %v215 = vadd.f32 %v183, %v193
        %v216 = vadd.f32 %v184, %v196
        %v217 = vadd.f32 %v185, %v199
        %v218 = vadd.f32 %v186, %v202
        %v219 = vadd.f32 %v187, %v205
        %v220 = vadd.f32 %v188, %v208
        %v221 = vadd.f32 %v189, %v211
        %v222 = vadd.f32 %v190, %v214
        %vm223 = vcmask 7168
        %224 = vst.msk [vmem:[#allocation2] sm:$0xff] %vm223, %v215
        %225 = vst.msk [vmem:[#allocation2 + $0x8] sm:$0xff] %vm223, %v216
        %226 = vst.msk [vmem:[#allocation2 + $0x10] sm:$0xff] %vm223, %v217
        %227 = vst.msk [vmem:[#allocation2 + $0x18] sm:$0xff] %vm223, %v218
        %228 = vst.msk [vmem:[#allocation2 + $0x20] sm:$0xff] %vm223, %v219
        %229 = vst.msk [vmem:[#allocation2 + $0x28] sm:$0xff] %vm223, %v220
        %230 = vst.msk [vmem:[#allocation2 + $0x30] sm:$0xff] %vm223, %v221
        %231 = vst.msk [vmem:[#allocation2 + $0x38] sm:$0xff] %vm223, %v222
        // Predicated region
        $region33: #{tpu_custom_call.1} parent=23 // pred_check
          %p232 = pneg %p154
        $region34: #{tpu_custom_call.1} parent=23 // pred_check_branch
          %234 = sbr.rel (%p232) target = $region36
        $region35: #{tpu_custom_call.1} parent=23 // pred_region
          %v235 = vld [vmem:[#allocation2] sm:$0xff]
          %v236 = vld [vmem:[#allocation2 + $0x8] sm:$0xff]
          %v237 = vld [vmem:[#allocation2 + $0x10] sm:$0xff]
          %v238 = vld [vmem:[#allocation2 + $0x18] sm:$0xff]
          %v239 = vld [vmem:[#allocation2 + $0x20] sm:$0xff]
          %v240 = vld [vmem:[#allocation2 + $0x28] sm:$0xff]
          %v241 = vld [vmem:[#allocation2 + $0x30] sm:$0xff]
          %v242 = vld [vmem:[#allocation2 + $0x38] sm:$0xff]
          %v243 = vmul.f32 %v235, 0.00390625
          %v244 = vmul.f32 %v236, 0.00390625
          %v245 = vmul.f32 %v237, 0.00390625
          %v246 = vmul.f32 %v238, 0.00390625
          %v247 = vmul.f32 %v239, 0.00390625
          %v248 = vmul.f32 %v240, 0.00390625
          %v249 = vmul.f32 %v241, 0.00390625
          %v250 = vmul.f32 %v242, 0.00390625
          %251 = vst.msk [vmem:[%s153] sm:$0xff] %vm223, %v243
          %252 = vst.msk [vmem:[%s153 + $0x8] sm:$0xff] %vm223, %v244
          %253 = vst.msk [vmem:[%s153 + $0x10] sm:$0xff] %vm223, %v245
          %254 = vst.msk [vmem:[%s153 + $0x18] sm:$0xff] %vm223, %v246
          %255 = vst.msk [vmem:[%s153 + $0x20] sm:$0xff] %vm223, %v247
          %256 = vst.msk [vmem:[%s153 + $0x28] sm:$0xff] %vm223, %v248
          %257 = vst.msk [vmem:[%s153 + $0x30] sm:$0xff] %vm223, %v249
          %258 = vst.msk [vmem:[%s153 + $0x38] sm:$0xff] %vm223, %v250
        $region36: #{tpu_custom_call.1} parent=23 // pred_fallthru
          _
        %p259 = scmp.lt.s32.totalorder %s19, 1
        %s260 = scalar_select %p259, %s19, 1
        %s261 = smul.addr %s260, 8
        %s262 = smul.addr %s261, 8
        %s263 = scalar_lea.vmem %s1, %s262
        // Predicated region
        $region37: #{tpu_custom_call.1} parent=23 // pred_check
          %p264 = pneg %p73
        $region38: #{tpu_custom_call.1} parent=23 // pred_check_branch
          %266 = sbr.rel (%p264) target = $region40
        $region39: #{tpu_custom_call.1} parent=23 // pred_region
          _
        $region40: #{tpu_custom_call.1} parent=23 // pred_fallthru
          _
      $region24: #{tpu_custom_call.1} parent=5 // pred_fallthru
        _
      %p267 = scmp.le.s32.totalorder 2, %s10
      // Predicated region
      $region41: #{tpu_custom_call.1} parent=5 // pred_check
        %p268 = pneg %p267
      $region42: #{tpu_custom_call.1} parent=5 // pred_check_branch
        %270 = sbr.rel (%p268) target = $region44
      $region43: #{tpu_custom_call.1} parent=5 // pred_region
        %s271 = ssub.s32 %s10, 2
        // Predicated region
        $region45: #{tpu_custom_call.1} parent=43 // pred_check
          %p272 = pneg %p79
        $region46: #{tpu_custom_call.1} parent=43 // pred_check_branch
          %274 = sbr.rel (%p272) target = $region48
        $region47: #{tpu_custom_call.1} parent=43 // pred_region
          %p275 = scmp.lt.s32.totalorder %s21, 1
          %s276 = scalar_select %p275, %s21, 1
          %s277 = smul.addr %s276, 8
          %s278 = smul.addr %s277, 8
          %s279 = scalar_lea.vmem %s1, %s278
        $region48: #{tpu_custom_call.1} parent=43 // pred_fallthru
          _
      $region44: #{tpu_custom_call.1} parent=5 // pred_fallthru
        _
    $region6: #{tpu_custom_call.1} parent=1 // loop_footer
      %s14 = sadd.s32 1, %s10
    $region7: #{tpu_custom_call.1} parent=1 // loop_footer_branch
      %9 = sbr.rel target = $region3
    $region8: #{tpu_custom_call.1} parent=1 // loop_exit
      _
    %280 = vsyncpa [#allocation4], 1
    %s281 = scalar_lea.sflag [#allocation4], 1
    %282 = vsyncpa %s281, 1

</llo_original>
